<compile_context>
chip_gen: v5e
topology: v5e:2x2
jax: 0.10.0
libtpu: 0.0.40
codegen_flags: <defaults>
</compile_context>

<pallas_src>
import math
import functools

import jax
import jax.numpy as jnp
import numpy as np
from jax.experimental import pallas as pl
from jax.experimental.pallas import tpu as pltpu


# --------------------------------------------------------------------------
# Pallas kernel: fused antithetic sampling + per-pixel CE + pixel reduction
# --------------------------------------------------------------------------
def _ssn_fused_ce_kernel(mean_ref, sigma_ref, eps_ref, tgt_ref, out_ref, acc_ref,
                         *, half, hw, tile, need_mask):
    """Grid = (n_pixel_tiles, half).  One step handles one pixel tile of one
    antithetic eps draw and produces BOTH the '+' and '-' MC samples.

    mean_ref, sigma_ref : (B, C, T) f32 VMEM tiles
    eps_ref             : (B, C, T) bf16 VMEM tile (upcast to f32 in-kernel)
    tgt_ref             : (B, T) int32 VMEM tile
    out_ref             : (2*half, B, 1) f32   -- grid-invariant resident block
    acc_ref             : (2*half, B, 1) f32 VMEM scratch (per-sample sums)
    """
    p = pl.program_id(0)     # pixel-tile index (outer, reduction axis)
    mh = pl.program_id(1)    # antithetic-pair index (inner)

    mean = mean_ref[...]                              # (B, C, T) f32
    sigma = sigma_ref[...]                            # (B, C, T) f32
    eps = eps_ref[...].astype(jnp.float32)            # (B, C, T) bf16 -> f32
    tgt = tgt_ref[...]                                # (B, T) int32

    se = sigma * eps
    cls = jax.lax.broadcasted_iota(jnp.int32, mean.shape, 1)      # class ids
    onehot = cls == tgt[:, None, :]                               # (B, C, T) bool

    def log_prob_of_target(lg):
        # log softmax over the class axis (sublane reduce) + target gather.
        # TODO(synk): on v6e/v7x, exp in bf16 would halve EUP pressure once the
        # kernel is compute-bound; kept f32 here for exact parity.
        mmax = jnp.max(lg, axis=1, keepdims=True)                            # (B,1,T)
        lse = jnp.log(jnp.sum(jnp.exp(lg - mmax), axis=1)) + mmax[:, 0, :]   # (B,T)
        tgt_logit = jnp.sum(jnp.where(onehot, lg, 0.0), axis=1)              # (B,T)
        return tgt_logit - lse                                               # (B,T)

    lp_plus = log_prob_of_target(mean + se)    # sample m = mh
    lp_minus = log_prob_of_target(mean - se)   # sample m = mh + half

    if need_mask:
        # Ragged last pixel tile: zero out contributions from padded pixels.
        # (Only compiled in when no divisor-of-HW tile was available.)
        pix = p * tile + jax.lax.broadcasted_iota(jnp.int32, lp_plus.shape, 1)
        valid = pix < hw
        lp_plus = jnp.where(valid, lp_plus, 0.0)
        lp_minus = jnp.where(valid, lp_minus, 0.0)

    # Cross-lane reduce each step into a tiny (2*half, B, 1) accumulator.
    s_plus = jnp.sum(lp_plus, axis=-1, keepdims=True)      # (B, 1)
    s_minus = jnp.sum(lp_minus, axis=-1, keepdims=True)    # (B, 1)

    @pl.when(p == 0)
    def _init():
        acc_ref[mh] = s_plus
        acc_ref[mh + half] = s_minus

    @pl.when(p != 0)
    def _accumulate():
        acc_ref[mh] = acc_ref[mh] + s_plus
        acc_ref[mh + half] = acc_ref[mh + half] + s_minus

    @pl.when(p == pl.num_programs(0) - 1)
    def _finalize():
        # out block index is grid-invariant -> stays resident in VMEM and is
        # written back to HBM exactly once, at kernel completion.
        out_ref[mh] = acc_ref[mh]
        out_ref[mh + half] = acc_ref[mh + half]


# --------------------------------------------------------------------------
# VMEM-budget-aware pixel-tile selection
# --------------------------------------------------------------------------
def _round_up(x, m):
    return ((x + m - 1) // m) * m


def _choose_tile(*, HW, B, C):
    """Pick the pixel-tile width and the scoped-VMEM limit for this chip."""
    try:
        vmem_cap = int(pltpu.get_tpu_info().vmem_capacity_bytes)
    except Exception:
        vmem_cap = 64 * 1024 * 1024          # conservative fallback (v7x per-TC)
    # Raise the scoped-VMEM limit well above the default, leaving headroom for
    # compiler-internal scratch.
    vmem_limit = max(32 * 1024 * 1024,
                     min(vmem_cap - 8 * 1024 * 1024, 120 * 1024 * 1024))

    c_f32 = _round_up(C, 8)      # f32 sublane padding of the class axis
    c_bf16 = _round_up(C, 16)    # bf16 sublane padding of the class axis
    b_pad = _round_up(B, 8)

    # VMEM bytes per pixel lane of the tile (double-buffered pipeline blocks
    # plus headroom for live f32 temporaries / register spill).
    per_lane = 0
    per_lane += 2 * 2 * (B * c_f32 * 4)      # mean + sigma blocks (f32) x2 buffers
    per_lane += 2 * (B * c_bf16 * 2)         # eps block (bf16) x2 buffers
    per_lane += 2 * (b_pad * 4)              # target block (int32) x2 buffers
    per_lane += 10 * (B * c_f32 * 4)         # live f32 temporaries headroom

    budget = vmem_limit // 2
    tile_cap = max(256, budget // per_lane)
    tile_cap = min(tile_cap, 16384)          # keep per-step latency reasonable

    if HW <= tile_cap:
        return HW, 1, False, vmem_limit      # single full-extent tile, no mask

    tile = (tile_cap // 128) * 128
    # Prefer the largest multiple-of-128 tile <= tile_cap that divides HW so
    # the ragged-tile mask is compiled out entirely.
    divisor = 0
    t = tile
    while t >= 128:
        if HW % t == 0:
            divisor = t
            break
        t -= 128
    if divisor >= tile // 2:
        tile, need_mask = divisor, False
    else:
        need_mask = (HW % tile) != 0
    n_tiles = -(-HW // tile)
    return tile, n_tiles, need_mask, vmem_limit


# --------------------------------------------------------------------------
# pallas_call wrapper
# --------------------------------------------------------------------------
def _per_sample_loglik_pallas(mean_f, sigma_f, eps_f, tgt_f):
    """mean_f, sigma_f: (B, C, HW) f32; eps_f: (half, B, C, HW) bf16;
    tgt_f: (B, HW) int32.

    Returns (2*half, B, 1) f32: sum over pixels of log p(target | logits).
    Row m < half is the '+' sample of eps draw m; row m >= half is the '-'
    sample of draw m - half (matching torch's cat([samples, -samples]) order).
    """
    half, B, C, HW = eps_f.shape
    tile, n_tiles, need_mask, vmem_limit = _choose_tile(HW=HW, B=B, C=C)

    kernel = functools.partial(
        _ssn_fused_ce_kernel, half=half, hw=HW, tile=tile, need_mask=need_mask)

    return pl.pallas_call(
        kernel,
        out_shape=jax.ShapeDtypeStruct((2 * half, B, 1), jnp.float32),
        grid_spec=pltpu.PrefetchScalarGridSpec(
            num_scalar_prefetch=0,
            grid=(n_tiles, half),      # pixel tiles outer, MC pairs inner
            in_specs=[
                # mean / sigma / target blocks depend only on the pixel tile p,
                # so they stay resident in VMEM across the inner MC-sample loop.
                pl.BlockSpec((B, C, tile), lambda p, mh: (0, 0, p)),            # mean
                pl.BlockSpec((B, C, tile), lambda p, mh: (0, 0, p)),            # sigma
                pl.BlockSpec((None, B, C, tile), lambda p, mh: (mh, 0, 0, p)),  # eps
                pl.BlockSpec((B, tile), lambda p, mh: (0, p)),                  # target
            ],
            # Grid-invariant resident output block: one HBM writeback at the
            # very end of the kernel; no stale-buffer revisit writebacks.
            out_specs=pl.BlockSpec((2 * half, B, 1), lambda p, mh: (0, 0, 0)),
            scratch_shapes=[pltpu.VMEM((2 * half, B, 1), jnp.float32)],
        ),
        compiler_params=pltpu.CompilerParams(
            # Pixel axis is a reduction (accumulator in scratch) -> arbitrary.
            # TODO(synk): on v7x the MC-pair axis could be sharded across the
            # two TensorCores; kept single-core to keep the resident output
            # block and the pixels-outer/samples-inner HBM-traffic ordering.
            dimension_semantics=("arbitrary", "arbitrary"),
            vmem_limit_bytes=int(vmem_limit)),
    )(mean_f, sigma_f, eps_f, tgt_f)


# --------------------------------------------------------------------------
# Module-equivalent wrapper
# --------------------------------------------------------------------------
def ssn_loss_mc_integral(logits, target, dist_mean, dist_sigma, *,
                         num_mc_samples, key):
    """Forward pass of StochasticSegmentationNetworkLossMCIntegral.

    logits:     (B, C, H, W)  -- only used for shape checks, as in PyTorch
    target:     (B, H, W)     -- integer class labels
    dist_mean:  (B, C, H, W)  -- mean of the (diagonal Normal) logit distribution
    dist_sigma: (B, C, H, W)  -- scale of the logit distribution
    """
    B = logits.shape[0]
    C = logits.shape[1]
    assert C >= 2
    M = num_mc_samples
    assert M % 2 == 0
    half = M // 2

    H, W = dist_mean.shape[-2], dist_mean.shape[-1]
    HW = H * W

    # Antithetic trick: sample m<half uses +eps, sample m>=half uses -eps.
    # The +/- application is fused into the kernel; eps is the only stream that
    # scales with M, so it is stored bf16 in HBM (halves the dominant traffic).
    # TODO(synk): generating eps in-kernel (pltpu.prng_*) would remove this
    # stream entirely but changes the random stream vs. the reference.
    eps = jax.random.normal(key, (half, B, C, H, W),
                            dtype=jnp.float32).astype(jnp.bfloat16)

    mean_f = dist_mean.reshape(B, C, HW).astype(jnp.float32)
    sigma_f = dist_sigma.reshape(B, C, HW).astype(jnp.float32)
    eps_f = eps.reshape(half, B, C, HW)
    tgt_f = target.reshape(B, HW).astype(jnp.int32)

    sums = _per_sample_loglik_pallas(mean_f, sigma_f, eps_f, tgt_f)  # (M, B, 1)
    sums = sums[..., 0]                                              # (M, B)

    loglikelihood = jnp.mean(
        jax.scipy.special.logsumexp(sums, axis=0) - math.log(M))
    return -loglikelihood


# --------------------------------------------------------------------------
# Pure-JAX reference (mirrors the PyTorch forward exactly, same eps)
# --------------------------------------------------------------------------
def ssn_loss_reference(logits, target, dist_mean, dist_sigma, *,
                       num_mc_samples, key):
    B, C, H, W = dist_mean.shape
    M = num_mc_samples
    half = M // 2
    eps = jax.random.normal(key, (half, B, C, H, W),
                            dtype=jnp.float32).astype(jnp.bfloat16)
    eps = eps.astype(jnp.float32)

    # torch fixed_re_parametrization_trick with rsample = mean + sigma * eps
    samples = dist_mean[None] + dist_sigma[None] * eps
    centered = samples - dist_mean[None]
    logit_sample = jnp.concatenate([centered, -centered], axis=0) + dist_mean[None]

    HW = H * W
    lg = logit_sample.reshape(M * B, C, HW).astype(jnp.float32)
    tgt = jnp.broadcast_to(target[None].astype(jnp.int32),
                           (M, B, H, W)).reshape(M * B, HW)
    logp = jax.nn.log_softmax(lg, axis=1)
    lp_t = jnp.take_along_axis(logp, tgt[:, None, :], axis=1)[:, 0, :]
    log_prob = lp_t.reshape(M, B, HW)
    loglik = jnp.mean(
        jax.scipy.special.logsumexp(jnp.sum(log_prob, axis=-1), axis=0)
        - math.log(M))
    return -loglik


if __name__ == "__main__":
    # Small deterministic example: B=2, C=4, H=W=16, num_mc_samples=4
    B, C, H, W = 2, 4, 16, 16
    num_mc_samples = 4

    key = jax.random.PRNGKey(0)
    k_mean, k_sigma, k_tgt, k_eps = jax.random.split(key, 4)

    dist_mean = jax.random.normal(k_mean, (B, C, H, W), dtype=jnp.float32)
    dist_sigma = 0.1 + 0.2 * jax.nn.softplus(
        jax.random.normal(k_sigma, (B, C, H, W), dtype=jnp.float32))
    logits = dist_mean  # "logits" argument (only shapes are used, as in torch)
    target = jax.random.randint(k_tgt, (B, H, W), 0, C, dtype=jnp.int32)

    loss = ssn_loss_mc_integral(
        logits, target, dist_mean, dist_sigma,
        num_mc_samples=num_mc_samples, key=k_eps)
    loss = jax.block_until_ready(loss)

    ref = jax.block_until_ready(ssn_loss_reference(
        logits, target, dist_mean, dist_sigma,
        num_mc_samples=num_mc_samples, key=k_eps))

    np.testing.assert_allclose(np.asarray(loss), np.asarray(ref),
                               rtol=1e-4, atol=1e-4)
    print("KERNEL_OK")
</pallas_src>

<mosaic_0001>
module attributes {stable_mosaic.version = 11 : i64} {
  func.func @_ssn_fused_ce_kernel(%arg0: i32, %arg1: i32, %arg2: memref<2x4x256xf32, #tpu.memory_space<vmem>>, %arg3: memref<2x4x256xf32, #tpu.memory_space<vmem>>, %arg4: memref<1x2x4x256xbf16, #tpu.memory_space<vmem>>, %arg5: memref<2x256xi32, #tpu.memory_space<vmem>>, %arg6: memref<4x2x1xf32, #tpu.memory_space<vmem>>, %arg7: memref<4x2x1xf32, #tpu.memory_space<vmem>>) attributes {dimension_semantics = [#tpu.dimension_semantics<arbitrary>, #tpu.dimension_semantics<arbitrary>], iteration_bounds = array<i64: 1, 2>, scalar_prefetch = 0 : i64, scratch_operands = 1 : i64, tpu.core_type = #tpu.core_type<tc>, window_params = [{transform_indices = @transform_0, window_bounds = array<i64: 2, 4, 256>}, {transform_indices = @transform_1, window_bounds = array<i64: 2, 4, 256>}, {transform_indices = @transform_2, window_bounds = array<i64: 1, 2, 4, 256>}, {transform_indices = @transform_3, window_bounds = array<i64: 2, 256>}, {pipeline_mode = #tpu.pipeline_mode<synchronous>, transform_indices = @transform_4, window_bounds = array<i64: 4, 2, 1>}]} {
    %c0 = arith.constant 0 : index
    %c0_0 = arith.constant 0 : index
    %c0_1 = arith.constant 0 : index
    %0 = vector.load %arg2[%c0, %c0_0, %c0_1] : memref<2x4x256xf32, #tpu.memory_space<vmem>>, vector<2x4x256xf32>
    %c0_2 = arith.constant 0 : index
    %c0_3 = arith.constant 0 : index
    %c0_4 = arith.constant 0 : index
    %1 = vector.load %arg3[%c0_2, %c0_3, %c0_4] : memref<2x4x256xf32, #tpu.memory_space<vmem>>, vector<2x4x256xf32>
    %c0_5 = arith.constant 0 : index
    %c0_6 = arith.constant 0 : index
    %c0_7 = arith.constant 0 : index
    %c0_8 = arith.constant 0 : index
    %2 = vector.load %arg4[%c0_5, %c0_6, %c0_7, %c0_8] : memref<1x2x4x256xbf16, #tpu.memory_space<vmem>>, vector<1x2x4x256xbf16>
    %3 = vector.shape_cast %2 : vector<1x2x4x256xbf16> to vector<2x4x256xbf16>
    %4 = arith.extf %3 : vector<2x4x256xbf16> to vector<2x4x256xf32>
    %c0_9 = arith.constant 0 : index
    %c0_10 = arith.constant 0 : index
    %5 = vector.load %arg5[%c0_9, %c0_10] : memref<2x256xi32, #tpu.memory_space<vmem>>, vector<2x256xi32>
    %6 = arith.mulf %1, %4 : vector<2x4x256xf32>
    %7 = tpu.iota {dimensions = array<i32: 1>} : vector<2x4x256xi32>
    %8 = vector.shape_cast %5 : vector<2x256xi32> to vector<2x1x256xi32>
    %9 = vector.broadcast %8 : vector<2x1x256xi32> to vector<2x4x256xi32>
    %10 = arith.cmpi eq, %7, %9 : vector<2x4x256xi32>
    %11 = arith.addf %0, %6 : vector<2x4x256xf32>
    %cst = arith.constant dense<0xFF800000> : vector<2x256xf32>
    %12 = vector.multi_reduction <maximumf>, %11, %cst [1] : vector<2x4x256xf32> to vector<2x256xf32>
    %13 = vector.shape_cast %12 : vector<2x256xf32> to vector<2x1x256xf32>
    %14 = vector.broadcast %13 : vector<2x1x256xf32> to vector<2x4x256xf32>
    %15 = arith.subf %11, %14 : vector<2x4x256xf32>
    %16 = math.exp %15 : vector<2x4x256xf32>
    %cst_11 = arith.constant dense<0.000000e+00> : vector<2x256xf32>
    %17 = vector.multi_reduction <add>, %16, %cst_11 [1] : vector<2x4x256xf32> to vector<2x256xf32>
    %18 = math.log %17 : vector<2x256xf32>
    %19 = vector.shape_cast %13 : vector<2x1x256xf32> to vector<2x256xf32>
    %20 = arith.addf %18, %19 : vector<2x256xf32>
    %cst_12 = arith.constant 0.000000e+00 : f32
    %21 = vector.broadcast %cst_12 : f32 to vector<2x4x256xf32>
    %22 = arith.select %10, %11, %21 : vector<2x4x256xi1>, vector<2x4x256xf32>
    %cst_13 = arith.constant dense<0.000000e+00> : vector<2x256xf32>
    %23 = vector.multi_reduction <add>, %22, %cst_13 [1] : vector<2x4x256xf32> to vector<2x256xf32>
    %24 = arith.subf %23, %20 : vector<2x256xf32>
    %25 = arith.subf %0, %6 : vector<2x4x256xf32>
    %cst_14 = arith.constant dense<0xFF800000> : vector<2x256xf32>
    %26 = vector.multi_reduction <maximumf>, %25, %cst_14 [1] : vector<2x4x256xf32> to vector<2x256xf32>
    %27 = vector.shape_cast %26 : vector<2x256xf32> to vector<2x1x256xf32>
    %28 = vector.broadcast %27 : vector<2x1x256xf32> to vector<2x4x256xf32>
    %29 = arith.subf %25, %28 : vector<2x4x256xf32>
    %30 = math.exp %29 : vector<2x4x256xf32>
    %cst_15 = arith.constant dense<0.000000e+00> : vector<2x256xf32>
    %31 = vector.multi_reduction <add>, %30, %cst_15 [1] : vector<2x4x256xf32> to vector<2x256xf32>
    %32 = math.log %31 : vector<2x256xf32>
    %33 = vector.shape_cast %27 : vector<2x1x256xf32> to vector<2x256xf32>
    %34 = arith.addf %32, %33 : vector<2x256xf32>
    %cst_16 = arith.constant 0.000000e+00 : f32
    %35 = vector.broadcast %cst_16 : f32 to vector<2x4x256xf32>
    %36 = arith.select %10, %25, %35 : vector<2x4x256xi1>, vector<2x4x256xf32>
    %cst_17 = arith.constant dense<0.000000e+00> : vector<2x256xf32>
    %37 = vector.multi_reduction <add>, %36, %cst_17 [1] : vector<2x4x256xf32> to vector<2x256xf32>
    %38 = arith.subf %37, %34 : vector<2x256xf32>
    %cst_18 = arith.constant dense<0.000000e+00> : vector<2xf32>
    %39 = vector.multi_reduction <add>, %24, %cst_18 [1] : vector<2x256xf32> to vector<2xf32>
    %40 = vector.shape_cast %39 : vector<2xf32> to vector<2x1xf32>
    %cst_19 = arith.constant dense<0.000000e+00> : vector<2xf32>
    %41 = vector.multi_reduction <add>, %38, %cst_19 [1] : vector<2x256xf32> to vector<2xf32>
    %42 = vector.shape_cast %41 : vector<2xf32> to vector<2x1xf32>
    %c0_i32 = arith.constant 0 : i32
    %43 = arith.cmpi eq, %arg0, %c0_i32 : i32
    %44 = arith.extui %43 : i1 to i32
    %c0_i32_20 = arith.constant 0 : i32
    %45 = arith.cmpi ne, %44, %c0_i32_20 : i32
    scf.if %45 {
      %52 = arith.index_cast %arg1 : i32 to index
      %c0_25 = arith.constant 0 : index
      %c0_26 = arith.constant 0 : index
      %53 = vector.load %arg7[%52, %c0_25, %c0_26] : memref<4x2x1xf32, #tpu.memory_space<vmem>>, vector<1x2x1xf32>
      %54 = vector.shape_cast %53 : vector<1x2x1xf32> to vector<2x1xf32>
      %55 = vector.shape_cast %40 : vector<2x1xf32> to vector<1x2x1xf32>
      tpu.vector_store %arg7[%52, %c0_25, %c0_26], %55 {strides = array<i32>} : memref<4x2x1xf32, #tpu.memory_space<vmem>>, vector<1x2x1xf32>,
      %c2_i32 = arith.constant 2 : i32
      %56 = arith.addi %arg1, %c2_i32 : i32
      %57 = arith.index_cast %56 : i32 to index
      %c0_27 = arith.constant 0 : index
      %c0_28 = arith.constant 0 : index
      %58 = vector.load %arg7[%57, %c0_27, %c0_28] : memref<4x2x1xf32, #tpu.memory_space<vmem>>, vector<1x2x1xf32>
      %59 = vector.shape_cast %58 : vector<1x2x1xf32> to vector<2x1xf32>
      %60 = vector.shape_cast %42 : vector<2x1xf32> to vector<1x2x1xf32>
      tpu.vector_store %arg7[%57, %c0_27, %c0_28], %60 {strides = array<i32>} : memref<4x2x1xf32, #tpu.memory_space<vmem>>, vector<1x2x1xf32>,
    } else {
    }
    %c0_i32_21 = arith.constant 0 : i32
    %46 = arith.cmpi ne, %arg0, %c0_i32_21 : i32
    %47 = arith.extui %46 : i1 to i32
    %c0_i32_22 = arith.constant 0 : i32
    %48 = arith.cmpi ne, %47, %c0_i32_22 : i32
    scf.if %48 {
      %52 = arith.index_cast %arg1 : i32 to index
      %c0_25 = arith.constant 0 : index
      %c0_26 = arith.constant 0 : index
      %53 = vector.load %arg7[%52, %c0_25, %c0_26] : memref<4x2x1xf32, #tpu.memory_space<vmem>>, vector<1x2x1xf32>
      %54 = vector.shape_cast %53 : vector<1x2x1xf32> to vector<2x1xf32>
      %55 = arith.addf %54, %40 : vector<2x1xf32>
      %56 = arith.index_cast %arg1 : i32 to index
      %c0_27 = arith.constant 0 : index
      %c0_28 = arith.constant 0 : index
      %57 = vector.load %arg7[%56, %c0_27, %c0_28] : memref<4x2x1xf32, #tpu.memory_space<vmem>>, vector<1x2x1xf32>
      %58 = vector.shape_cast %57 : vector<1x2x1xf32> to vector<2x1xf32>
      %59 = vector.shape_cast %55 : vector<2x1xf32> to vector<1x2x1xf32>
      tpu.vector_store %arg7[%56, %c0_27, %c0_28], %59 {strides = array<i32>} : memref<4x2x1xf32, #tpu.memory_space<vmem>>, vector<1x2x1xf32>,
      %c2_i32 = arith.constant 2 : i32
      %60 = arith.addi %arg1, %c2_i32 : i32
      %61 = arith.index_cast %60 : i32 to index
      %c0_29 = arith.constant 0 : index
      %c0_30 = arith.constant 0 : index
      %62 = vector.load %arg7[%61, %c0_29, %c0_30] : memref<4x2x1xf32, #tpu.memory_space<vmem>>, vector<1x2x1xf32>
      %63 = vector.shape_cast %62 : vector<1x2x1xf32> to vector<2x1xf32>
      %64 = arith.addf %63, %42 : vector<2x1xf32>
      %c2_i32_31 = arith.constant 2 : i32
      %65 = arith.addi %arg1, %c2_i32_31 : i32
      %66 = arith.index_cast %65 : i32 to index
      %c0_32 = arith.constant 0 : index
      %c0_33 = arith.constant 0 : index
      %67 = vector.load %arg7[%66, %c0_32, %c0_33] : memref<4x2x1xf32, #tpu.memory_space<vmem>>, vector<1x2x1xf32>
      %68 = vector.shape_cast %67 : vector<1x2x1xf32> to vector<2x1xf32>
      %69 = vector.shape_cast %64 : vector<2x1xf32> to vector<1x2x1xf32>
      tpu.vector_store %arg7[%66, %c0_32, %c0_33], %69 {strides = array<i32>} : memref<4x2x1xf32, #tpu.memory_space<vmem>>, vector<1x2x1xf32>,
    } else {
    }
    %c0_i32_23 = arith.constant 0 : i32
    %49 = arith.cmpi eq, %arg0, %c0_i32_23 : i32
    %50 = arith.extui %49 : i1 to i32
    %c0_i32_24 = arith.constant 0 : i32
    %51 = arith.cmpi ne, %50, %c0_i32_24 : i32
    scf.if %51 {
      %52 = arith.index_cast %arg1 : i32 to index
      %c0_25 = arith.constant 0 : index
      %c0_26 = arith.constant 0 : index
      %53 = vector.load %arg7[%52, %c0_25, %c0_26] : memref<4x2x1xf32, #tpu.memory_space<vmem>>, vector<1x2x1xf32>
      %54 = vector.shape_cast %53 : vector<1x2x1xf32> to vector<2x1xf32>
      %55 = arith.index_cast %arg1 : i32 to index
      %c0_27 = arith.constant 0 : index
      %c0_28 = arith.constant 0 : index
      %56 = vector.load %arg6[%55, %c0_27, %c0_28] : memref<4x2x1xf32, #tpu.memory_space<vmem>>, vector<1x2x1xf32>
      %57 = vector.shape_cast %56 : vector<1x2x1xf32> to vector<2x1xf32>
      %58 = vector.shape_cast %54 : vector<2x1xf32> to vector<1x2x1xf32>
      tpu.vector_store %arg6[%55, %c0_27, %c0_28], %58 {strides = array<i32>} : memref<4x2x1xf32, #tpu.memory_space<vmem>>, vector<1x2x1xf32>,
      %c2_i32 = arith.constant 2 : i32
      %59 = arith.addi %arg1, %c2_i32 : i32
      %60 = arith.index_cast %59 : i32 to index
      %c0_29 = arith.constant 0 : index
      %c0_30 = arith.constant 0 : index
      %61 = vector.load %arg7[%60, %c0_29, %c0_30] : memref<4x2x1xf32, #tpu.memory_space<vmem>>, vector<1x2x1xf32>
      %62 = vector.shape_cast %61 : vector<1x2x1xf32> to vector<2x1xf32>
      %c2_i32_31 = arith.constant 2 : i32
      %63 = arith.addi %arg1, %c2_i32_31 : i32
      %64 = arith.index_cast %63 : i32 to index
      %c0_32 = arith.constant 0 : index
      %c0_33 = arith.constant 0 : index
      %65 = vector.load %arg6[%64, %c0_32, %c0_33] : memref<4x2x1xf32, #tpu.memory_space<vmem>>, vector<1x2x1xf32>
      %66 = vector.shape_cast %65 : vector<1x2x1xf32> to vector<2x1xf32>
      %67 = vector.shape_cast %62 : vector<2x1xf32> to vector<1x2x1xf32>
      tpu.vector_store %arg6[%64, %c0_32, %c0_33], %67 {strides = array<i32>} : memref<4x2x1xf32, #tpu.memory_space<vmem>>, vector<1x2x1xf32>,
    } else {
    }
    return
  }
  func.func @transform_0(%arg0: i32, %arg1: i32) -> (i32, i32, i32) {
    %c0_i32 = arith.constant 0 : i32
    %c0_i32_0 = arith.constant 0 : i32
    %c0_i32_1 = arith.constant 0 : i32
    return %c0_i32, %c0_i32_0, %arg0 : i32, i32, i32
  }
  func.func @transform_1(%arg0: i32, %arg1: i32) -> (i32, i32, i32) {
    %c0_i32 = arith.constant 0 : i32
    %c0_i32_0 = arith.constant 0 : i32
    %c0_i32_1 = arith.constant 0 : i32
    return %c0_i32, %c0_i32_0, %arg0 : i32, i32, i32
  }
  func.func @transform_2(%arg0: i32, %arg1: i32) -> (i32, i32, i32, i32) {
    %c0_i32 = arith.constant 0 : i32
    %c0_i32_0 = arith.constant 0 : i32
    %c0_i32_1 = arith.constant 0 : i32
    return %arg1, %c0_i32, %c0_i32_0, %arg0 : i32, i32, i32, i32
  }
  func.func @transform_3(%arg0: i32, %arg1: i32) -> (i32, i32) {
    %c0_i32 = arith.constant 0 : i32
    %c0_i32_0 = arith.constant 0 : i32
    return %c0_i32, %arg0 : i32, i32
  }
  func.func @transform_4(%arg0: i32, %arg1: i32) -> (i32, i32, i32) {
    %c0_i32 = arith.constant 0 : i32
    %c0_i32_0 = arith.constant 0 : i32
    %c0_i32_1 = arith.constant 0 : i32
    %c0_i32_2 = arith.constant 0 : i32
    return %c0_i32, %c0_i32_0, %c0_i32_1 : i32, i32, i32
  }
}

</mosaic_0001>

<llo_original>
// kernel: tpu_custom_call.1
$region0: #{tpu_custom_call.1}
  #allocation0 [shape = 'u32[]', space=smem, size = 0x4, offset = 0x4, fixed_abs, tag = 'smem constant byte address 0x4 - core index']
  #allocation1 [shape = 'u32[72,128]{1,0:T(1,128)}', space=vmem, size = 0x9000, scoped, tag = 'internal scratch']
  #allocation2 [shape = 'f32[4,2,1]{2,1,0:T(2,128)}', space=vmem, size = 0x1000, scoped, tag = 'scratch operand']
  %s0 = inlined_call_operand.hbm [shape: f32[2,4,256], index: 0, kind: input, shape index: {}]
  %s1 = inlined_call_operand.hbm [shape: f32[2,4,256], index: 1, kind: input, shape index: {}]
  %s2 = inlined_call_operand.hbm [shape: bf16[2,2,4,256], index: 2, kind: input, shape index: {}]
  %s3 = inlined_call_operand.hbm [shape: s32[2,256], index: 3, kind: input, shape index: {}]
  %s4 = inlined_call_operand.vmem [shape: f32[4,2,1], index: 4, kind: output, shape index: {}]
  %s5 = sld [smem:[#allocation0]]
  $region77: #{tpu_custom_call.1} parent=0
    _
  %s7 = ssub.s32 1, %s5
  %s8 = scalar_select 0, %s7, %s5
  $region1: #{tpu_custom_call.1} parent=0
    #allocation3 [shape = 'u8[8192]{0}', space=vmem, size = 0x2000, scoped, tag = 'input window, operand 0, single buffered']
    #allocation4 [shape = 's32[2]{0}', space=sflag, size = 0x8, scoped, tag = 'scoped memory for tpu_custom_call.1']
    #allocation5 [shape = 'u8[8192]{0}', space=vmem, size = 0x2000, scoped, tag = 'input window, operand 1, single buffered']
    #allocation6 [shape = 's32[1]{0}', space=sflag, size = 0x4, scoped, tag = 'scoped memory for tpu_custom_call.1']
    #allocation7 [shape = 'u8[8192]{0}', space=vmem, size = 0x2000, scoped, tag = 'input window, operand 2']
    #allocation8 [shape = 'u8[2048]{0}', space=vmem, size = 0x800, scoped, tag = 'input window, operand 3, single buffered']
    %9 = vsyncpa [#allocation4], 0
    %10 = vsyncpa [#allocation6], 0
    loop: start=0, step=1, limit=4
    $region2: #{tpu_custom_call.1} parent=1 // loop_pre_header
      _
    $region3: #{tpu_custom_call.1} parent=1 // loop_header
      %s12 = sphi 0, %s16
      %p13 = scmp.ge.s32.totalorder %s12, 4
      %s19 = sphi 0, %s31
      %s20 = sphi 0, %s27
      %s21 = sphi 0, %s19
      %s22 = sphi 0, %s20
      %s23 = sphi 0, %s21
      %s24 = sphi 0, %s22
      %s34 = sphi 0, %s36
      %s37 = sphi 0, %s34
      %s38 = sphi 0, %s37
      %s54 = sphi 0, %s38
      %s60 = sphi 0, %s62
      %s63 = sphi 0, %s60
      %s64 = sphi 0, %s63
      %s80 = sphi 0, %s64
      %s88 = sphi 0, %s90
      %s91 = sphi 0, %s88
      %s92 = sphi 0, %s91
      %s108 = sphi 0, %s92
      %s114 = sphi 0, %s116
      %s117 = sphi 0, %s114
      %s118 = sphi 0, %s117
      %s134 = sphi 0, %s118
      %s138 = sphi 0, %s138
      %s140 = sphi 0, %s138
      %s141 = sphi 0, %s140
      %s155 = sphi 0, %s141
    $region4: #{tpu_custom_call.1} parent=1 // loop_header_branch
      %15 = sbr.rel (%p13) target = $region8
    $region5: #{tpu_custom_call.1} parent=1 // loop_body
      %s17 = ssub.s32 %s12, 1
      %s18 = ssub.s32 %s12, 2
      %s25 = sadd.s32 1, %s20
      %p26 = scmp.ge.s32.totalorder %s25, 2
      %s27 = scalar_select %p26, 0, %s25
      %s28 = sadd.s32 1, %s19
      %s29 = scalar_select %p26, %s28, %s19
      %p30 = scmp.ge.s32.totalorder %s29, 1
      %s31 = scalar_select %p30, 0, %s29
      %s32 = ssub.s32 %s19, %s31
      %p33 = scmp.eq.s32.totalorder %s32, 0
      %s35 = sadd.s32 %s34, 1
      %s36 = scalar_select %p33, %s34, %s35
      %p39 = pneg %p33
      %p40 = scmp.eq.s32.totalorder %s12, 1
      %p41 = por %p39, %p40
      %p42 = scmp.ne.s32.totalorder %s34, %s37
      %p43 = scmp.eq.s32.totalorder %s12, 0
      %p44 = por %p42, %p43
      %p45 = scmp.ne.s32.totalorder %s34, %s37
      %p46 = scmp.eq.s32.totalorder %s17, 1
      %p47 = por %p45, %p46
      %p48 = scmp.ne.s32.totalorder %s37, %s38
      %p49 = scmp.eq.s32.totalorder %s17, 0
      %p50 = por %p48, %p49
      %p51 = scmp.ne.s32.totalorder %s37, %s38
      %p52 = scmp.eq.s32.totalorder %s18, 1
      %p53 = por %p51, %p52
      %p55 = scmp.ne.s32.totalorder %s38, %s54
      %p56 = scmp.eq.s32.totalorder %s18, 0
      %p57 = por %p55, %p56
      %s58 = ssub.s32 %s19, %s31
      %p59 = scmp.eq.s32.totalorder %s58, 0
      %s61 = sadd.s32 %s60, 1
      %s62 = scalar_select %p59, %s60, %s61
      %p65 = pneg %p59
      %p66 = scmp.eq.s32.totalorder %s12, 1
      %p67 = por %p65, %p66
      %p68 = scmp.ne.s32.totalorder %s60, %s63
      %p69 = scmp.eq.s32.totalorder %s12, 0
      %p70 = por %p68, %p69
      %p71 = scmp.ne.s32.totalorder %s60, %s63
      %p72 = scmp.eq.s32.totalorder %s17, 1
      %p73 = por %p71, %p72
      %p74 = scmp.ne.s32.totalorder %s63, %s64
      %p75 = scmp.eq.s32.totalorder %s17, 0
      %p76 = por %p74, %p75
      %p77 = scmp.ne.s32.totalorder %s63, %s64
      %p78 = scmp.eq.s32.totalorder %s18, 1
      %p79 = por %p77, %p78
      %p81 = scmp.ne.s32.totalorder %s64, %s80
      %p82 = scmp.eq.s32.totalorder %s18, 0
      %p83 = por %p81, %p82
      %s84 = ssub.s32 %s20, %s27
      %s85 = ssub.s32 %s19, %s31
      %s86 = sor.u32 %s84, %s85
      %p87 = scmp.eq.s32.totalorder %s86, 0
      %s89 = sadd.s32 %s88, 1
      %s90 = scalar_select %p87, %s88, %s89
      %p93 = pneg %p87
      %p94 = scmp.eq.s32.totalorder %s12, 1
      %p95 = por %p93, %p94
      %p96 = scmp.ne.s32.totalorder %s88, %s91
      %p97 = scmp.eq.s32.totalorder %s12, 0
      %p98 = por %p96, %p97
      %p99 = scmp.ne.s32.totalorder %s88, %s91
      %p100 = scmp.eq.s32.totalorder %s17, 1
      %p101 = por %p99, %p100
      %p102 = scmp.ne.s32.totalorder %s91, %s92
      %p103 = scmp.eq.s32.totalorder %s17, 0
      %p104 = por %p102, %p103
      %p105 = scmp.ne.s32.totalorder %s91, %s92
      %p106 = scmp.eq.s32.totalorder %s18, 1
      %p107 = por %p105, %p106
      %p109 = scmp.ne.s32.totalorder %s92, %s108
      %p110 = scmp.eq.s32.totalorder %s18, 0
      %p111 = por %p109, %p110
      %s112 = ssub.s32 %s19, %s31
      %p113 = scmp.eq.s32.totalorder %s112, 0
      %s115 = sadd.s32 %s114, 1
      %s116 = scalar_select %p113, %s114, %s115
      %p119 = pneg %p113
      %p120 = scmp.eq.s32.totalorder %s12, 1
      %p121 = por %p119, %p120
      %p122 = scmp.ne.s32.totalorder %s114, %s117
      %p123 = scmp.eq.s32.totalorder %s12, 0
      %p124 = por %p122, %p123
      %p125 = scmp.ne.s32.totalorder %s114, %s117
      %p126 = scmp.eq.s32.totalorder %s17, 1
      %p127 = por %p125, %p126
      %p128 = scmp.ne.s32.totalorder %s117, %s118
      %p129 = scmp.eq.s32.totalorder %s17, 0
      %p130 = por %p128, %p129
      %p131 = scmp.ne.s32.totalorder %s117, %s118
      %p132 = scmp.eq.s32.totalorder %s18, 1
      %p133 = por %p131, %p132
      %p135 = scmp.ne.s32.totalorder %s118, %s134
      %p136 = scmp.eq.s32.totalorder %s18, 0
      %p137 = por %p135, %p136
      %s139 = sadd.s32 %s138, 1
      %p142 = scmp.eq.s32.totalorder %s12, 1
      %p143 = scmp.ne.s32.totalorder %s138, %s140
      %p144 = scmp.eq.s32.totalorder %s12, 0
      %p145 = por %p143, %p144
      %p146 = scmp.ne.s32.totalorder %s138, %s140
      %p147 = scmp.eq.s32.totalorder %s17, 1
      %p148 = por %p146, %p147
      %p149 = scmp.ne.s32.totalorder %s140, %s141
      %p150 = scmp.eq.s32.totalorder %s17, 0
      %p151 = por %p149, %p150
      %p152 = scmp.ne.s32.totalorder %s140, %s141
      %p153 = scmp.eq.s32.totalorder %s18, 1
      %p154 = por %p152, %p153
      %p156 = scmp.ne.s32.totalorder %s141, %s155
      %p157 = scmp.eq.s32.totalorder %s18, 0
      %p158 = por %p156, %p157
      %p159 = scmp.le.s32.totalorder 1, %s12
      %p160 = scmp.lt.s32.totalorder %s12, 3
      %p161 = pnand %p159, %p160
      %p162 = pneg %p161
      // Predicated region
      $region9: #{tpu_custom_call.1} parent=5 // pred_check
        _
      $region10: #{tpu_custom_call.1} parent=5 // pred_check_branch
        %164 = sbr.rel (%p161) target = $region12
      $region11: #{tpu_custom_call.1} parent=5 // pred_region
        %s165 = ssub.s32 %s12, 1
        // Predicated region
        $region13: #{tpu_custom_call.1} parent=11 // pred_check
          %p166 = pneg %p50
        $region14: #{tpu_custom_call.1} parent=11 // pred_check_branch
          %168 = sbr.rel (%p166) target = $region16
        $region15: #{tpu_custom_call.1} parent=11 // pred_region
          %s169 = smul.u32 2, %s21
          %171 = vsyncadd [#allocation4], 0
          %s172 = smul.addr %s169, 4
          %s173 = scalar_lea.hbm %s0, %s172
          %s174 = sshll.u32 %s173, 4
          %s175 = int_to_ptr.hbm [resolvable:$true] %s174
          %s176 = sshll.u32 [#allocation3], 4
          %s177 = int_to_ptr.vmem [resolvable:$true] %s176
          %182 = dma.hbm_to_vmem [thread:$0]  %s175, 256, %s177, [#allocation4], 128, 128, 8
        $region16: #{tpu_custom_call.1} parent=11 // pred_fallthru
          _
        // Predicated region
        $region17: #{tpu_custom_call.1} parent=11 // pred_check
          %p183 = pneg %p76
        $region18: #{tpu_custom_call.1} parent=11 // pred_check_branch
          %185 = sbr.rel (%p183) target = $region20
        $region19: #{tpu_custom_call.1} parent=11 // pred_region
          %s186 = smul.u32 2, %s21
          %188 = vsyncadd [#allocation6], 0
          %s189 = smul.addr %s186, 4
          %s190 = scalar_lea.hbm %s1, %s189
          %s191 = sshll.u32 %s190, 4
          %s192 = int_to_ptr.hbm [resolvable:$true] %s191
          %s193 = sshll.u32 [#allocation5], 4
          %s194 = int_to_ptr.vmem [resolvable:$true] %s193
          %199 = dma.hbm_to_vmem [thread:$0]  %s192, 256, %s194, [#allocation6], 128, 128, 8
        $region20: #{tpu_custom_call.1} parent=11 // pred_fallthru
          _
        // Predicated region
        $region21: #{tpu_custom_call.1} parent=11 // pred_check
          %p200 = pneg %p130
        $region22: #{tpu_custom_call.1} parent=11 // pred_check_branch
          %202 = sbr.rel (%p200) target = $region24
        $region23: #{tpu_custom_call.1} parent=11 // pred_region
          %s203 = smul.u32 2, %s21
          %205 = vsyncadd [#allocation6], 0
          %s206 = smul.addr %s203, 2
          %s207 = scalar_lea.hbm %s3, %s206
          %s209 = sshll.u32 %s207, 4
          %s210 = int_to_ptr.hbm [resolvable:$true] %s209
          %s211 = sshll.u32 [#allocation8], 4
          %s212 = int_to_ptr.vmem [resolvable:$true] %s211
          %214 = dma.hbm_to_vmem [thread:$0]  %s210, 64, %s212, [#allocation6]
        $region24: #{tpu_custom_call.1} parent=11 // pred_fallthru
          _
      $region12: #{tpu_custom_call.1} parent=5 // pred_fallthru
        _
      %p215 = scmp.lt.s32.totalorder %s12, 2
      // Predicated region
      $region25: #{tpu_custom_call.1} parent=5 // pred_check
        %p216 = pneg %p215
      $region26: #{tpu_custom_call.1} parent=5 // pred_check_branch
        %218 = sbr.rel (%p216) target = $region28
      $region27: #{tpu_custom_call.1} parent=5 // pred_region
        // Predicated region
        $region29: #{tpu_custom_call.1} parent=27 // pred_check
          %p219 = pneg %p98
        $region30: #{tpu_custom_call.1} parent=27 // pred_check_branch
          %221 = sbr.rel (%p219) target = $region32
        $region31: #{tpu_custom_call.1} parent=27 // pred_region
          %s222 = sand.u32 %s12, 1
          %s223 = scalar_lea.sflag [#allocation4], %s222
          %s224 = sand.u32 %s88, 1
          %s225 = smul.addr %s224, 8
          %s226 = scalar_lea.vmem [#allocation7], %s225
          %s227 = smul.u32 2, %s19
          %229 = vsyncadd %s223, 0
          %s230 = smul.addr %s20, 4
          %s231 = sadd.s32 %s227, %s230
          %s232 = smul.addr %s231, 2
          %s233 = scalar_lea.hbm %s2, %s232
          %s234 = sshll.u32 %s233, 4
          %s235 = int_to_ptr.hbm [resolvable:$true] %s234
          %s236 = sshll.u32 %s226, 4
          %s237 = int_to_ptr.vmem [resolvable:$true] %s236
          %242 = dma.hbm_to_vmem [thread:$0]  %s235, 128, %s237, %s223, 64, 64, 4
        $region32: #{tpu_custom_call.1} parent=27 // pred_fallthru
          _
      $region28: #{tpu_custom_call.1} parent=5 // pred_fallthru
        _
      %p243 = scmp.le.s32.totalorder 1, %s12
      %p244 = scmp.lt.s32.totalorder %s12, 3
      %p245 = pnand %p243, %p244
      %p246 = pneg %p245
      // Predicated region
      $region33: #{tpu_custom_call.1} parent=5 // pred_check
        _
      $region34: #{tpu_custom_call.1} parent=5 // pred_check_branch
        %248 = sbr.rel (%p245) target = $region36
      $region35: #{tpu_custom_call.1} parent=5 // pred_region
        %s249 = ssub.s32 %s12, 1
        // Predicated region
        $region37: #{tpu_custom_call.1} parent=35 // pred_check
          %p250 = pneg %p50
        $region38: #{tpu_custom_call.1} parent=35 // pred_check_branch
          %252 = sbr.rel (%p250) target = $region40
        $region39: #{tpu_custom_call.1} parent=35 // pred_region
          %254 = dma.done [#allocation4], 256
        $region40: #{tpu_custom_call.1} parent=35 // pred_fallthru
          _
        // Predicated region
        $region41: #{tpu_custom_call.1} parent=35 // pred_check
          %p255 = pneg %p76
        $region42: #{tpu_custom_call.1} parent=35 // pred_check_branch
          %257 = sbr.rel (%p255) target = $region44
        $region43: #{tpu_custom_call.1} parent=35 // pred_region
          %259 = dma.done [#allocation6], 256
        $region44: #{tpu_custom_call.1} parent=35 // pred_fallthru
          _
        %s260 = sand.u32 %s17, 1
        %s261 = scalar_lea.sflag [#allocation4], %s260
        %s262 = sand.u32 %s91, 1
        %s263 = smul.addr %s262, 8
        %s264 = scalar_lea.vmem [#allocation7], %s263
        // Predicated region
        $region45: #{tpu_custom_call.1} parent=35 // pred_check
          %p265 = pneg %p104
        $region46: #{tpu_custom_call.1} parent=35 // pred_check_branch
          %267 = sbr.rel (%p265) target = $region48
        $region47: #{tpu_custom_call.1} parent=35 // pred_region
          %269 = dma.done %s261, 128
        $region48: #{tpu_custom_call.1} parent=35 // pred_fallthru
          _
        // Predicated region
        $region49: #{tpu_custom_call.1} parent=35 // pred_check
          %p270 = pneg %p130
        $region50: #{tpu_custom_call.1} parent=35 // pred_check_branch
          %272 = sbr.rel (%p270) target = $region52
        $region51: #{tpu_custom_call.1} parent=35 // pred_region
          %274 = dma.done [#allocation6], 64
        $region52: #{tpu_custom_call.1} parent=35 // pred_fallthru
          _
        %p275 = pneg %p50
        %p276 = pneg %p47
        %p277 = pneg %p76
        %p278 = pneg %p73
        %s279 = sand.u32 %s17, 1
        %s280 = scalar_lea.sflag [#allocation4], %s279
        %s281 = sand.u32 %s91, 1
        %s282 = smul.addr %s281, 8
        %s283 = scalar_lea.vmem [#allocation7], %s282
        %p284 = pneg %p104
        %p285 = pneg %p101
        %p286 = pneg %p130
        %p287 = pneg %p127
        %p288 = pneg %p151
        %p289 = pneg %p148
        %s290 = smul.u32 2, %s21
        %s291 = smul.u32 2, %s21
        %s292 = smul.u32 2, %s21
        %s293 = smul.u32 2, %s21
        %v294 = vld [vmem:[#allocation3] sm:$0xff]
        %v295 = vld [vmem:[#allocation3 + $0x8] sm:$0xff]
        %v296 = vld [vmem:[#allocation5] sm:$0xff]
        %v297 = vld [vmem:[#allocation5 + $0x8] sm:$0xff]
        %v298 = vld [vmem:[%s264] sm:$0xf]
        %v299 = vld [vmem:[%s264 + $0x4] sm:$0xf]
        %v300 = vunpack.c.l.bf16 %v298
        %v301 = vunpack.c.l.bf16 %v299
        %v302 = vld [vmem:[#allocation8] sm:$0xf]
        %v303 = vmul.f32 %v296, %v300
        %v304 = vmul.f32 %v297, %v301
        %v305 = vlaneseq
        %v306 = vshrl.u32 %v305, 7
        %v307 = vrot.slane %v302, 1
        %v308 = vrot.slane %v302, 2
        %v309 = vrot.slane %v302, 3
        %vm310 = vcmask 1040384
        %v311 = vsel %vm310, %v302, %v307
        %vm312 = vcmask 1042434
        %v313 = vsel %vm312, %v308, %v309
        %vm314 = vcmask 1041408
        %v315 = vsel %vm314, %v311, %v313
        %vm316 = vcmask 1041409
        %v317 = vsel %vm316, %v302, %v307
        %vm318 = vcmask 1043459
        %v319 = vsel %vm318, %v308, %v309
        %vm320 = vcmask 1042433
        %v321 = vsel %vm320, %v317, %v319
        %v322 = vrot.slane %v321, 1
        %v323 = vperm.slane %v315, 0
        %v324 = vperm.slane %v315, 1
        %v325 = vperm.slane %v322, 0
        %v326 = vperm.slane %v322, 1
        %vm327 = vcmp.eq.s32.totalorder %v306, %v323
        %vm328 = vcmp.eq.s32.totalorder %v306, %v324
        %vm329 = vcmp.eq.s32.totalorder %v306, %v325
        %vm330 = vcmp.eq.s32.totalorder %v306, %v326
        %v331 = vadd.f32 %v294, %v303
        %v332 = vadd.f32 %v295, %v304
        %335 = vst [vmem:[#allocation1] ss:$2 sm:$0xff] %v331
        %v336 = vld.sshfl [vmem:[#allocation1] sm:$0xff pattern:$0x75316420]
        %v337 = vld.sshfl [vmem:[#allocation1 + $0x8] sm:$0xff pattern:$0x75316420]
        %s338 = scalar_lea.vmem [#allocation1], 16
        %339 = vst [vmem:[%s338] ss:$2 sm:$0xff] %v332
        %v340 = vld.sshfl [vmem:[#allocation1 + $0x10] sm:$0xff pattern:$0x75316420]
        %v341 = vld.sshfl [vmem:[#allocation1 + $0x18] sm:$0xff pattern:$0x75316420]
        %vm346 = vcmask 1043456
        %v347 = vsel %vm346, %v336, -inf
        %v348 = vrot.slane %v347, 4
        %v349 = vmax.f32 %v347, %v348
        %v350 = vrot.slane %v349, 2
        %v351 = vmax.f32 %v349, %v350
        %v352 = vrot.slane %v351, 1
        %v353 = vmax.f32 %v351, %v352
        %v354 = vsel %vm346, %v337, -inf
        %v355 = vrot.slane %v354, 4
        %v356 = vmax.f32 %v354, %v355
        %v357 = vrot.slane %v356, 2
        %v358 = vmax.f32 %v356, %v357
        %v359 = vrot.slane %v358, 1
        %v360 = vmax.f32 %v358, %v359
        %v361 = vsel %vm346, %v340, -inf
        %v362 = vrot.slane %v361, 4
        %v363 = vmax.f32 %v361, %v362
        %v364 = vrot.slane %v363, 2
        %v365 = vmax.f32 %v363, %v364
        %v366 = vrot.slane %v365, 1
        %v367 = vmax.f32 %v365, %v366
        %v368 = vsel %vm346, %v341, -inf
        %v369 = vrot.slane %v368, 4
        %v370 = vmax.f32 %v368, %v369
        %v371 = vrot.slane %v370, 2
        %v372 = vmax.f32 %v370, %v371
        %v373 = vrot.slane %v372, 1
        %v374 = vmax.f32 %v372, %v373
        %v379 = vrot.slane %v360, 4
        %v380 = vrot.slane %v374, 4
        %v381 = vsel %vm346, %v353, %v379
        %v382 = vsel %vm346, %v367, %v380
        %v385 = vsub.f32 %v331, %v381
        %v386 = vsub.f32 %v332, %v382
        %v387 = vmul.f32 %v385, 1.442695
        %v388 = vpow.pop %v387
        %v389 = vmul.f32 %v386, 1.442695
        %v390 = vpow.pop %v389
        %393 = vst [vmem:[#allocation1] ss:$2 sm:$0xff] %v388
        %v394 = vld.sshfl [vmem:[#allocation1] sm:$0xff pattern:$0x75316420]
        %v395 = vld.sshfl [vmem:[#allocation1 + $0x8] sm:$0xff pattern:$0x75316420]
        %s396 = scalar_lea.vmem [#allocation1], 16
        %397 = vst [vmem:[%s396] ss:$2 sm:$0xff] %v390
        %v398 = vld.sshfl [vmem:[#allocation1 + $0x10] sm:$0xff pattern:$0x75316420]
        %v399 = vld.sshfl [vmem:[#allocation1 + $0x18] sm:$0xff pattern:$0x75316420]
        %v404 = vsel %vm346, %v394, 0.0
        %v405 = vrot.slane %v404, 4
        %v406 = vadd.f32 %v404, %v405
        %v407 = vrot.slane %v406, 2
        %v408 = vadd.f32 %v406, %v407
        %v409 = vrot.slane %v408, 1
        %v410 = vadd.f32 %v408, %v409
        %v411 = vsel %vm346, %v395, 0.0
        %v412 = vrot.slane %v411, 4
        %v413 = vadd.f32 %v411, %v412
        %v414 = vrot.slane %v413, 2
        %v415 = vadd.f32 %v413, %v414
        %v416 = vrot.slane %v415, 1
        %v417 = vadd.f32 %v415, %v416
        %v418 = vsel %vm346, %v398, 0.0
        %v419 = vrot.slane %v418, 4
        %v420 = vadd.f32 %v418, %v419
        %v421 = vrot.slane %v420, 2
        %v422 = vadd.f32 %v420, %v421
        %v423 = vrot.slane %v422, 1
        %v424 = vadd.f32 %v422, %v423
        %v425 = vsel %vm346, %v399, 0.0
        %v426 = vrot.slane %v425, 4
        %v427 = vadd.f32 %v425, %v426
        %v428 = vrot.slane %v427, 2
        %v429 = vadd.f32 %v427, %v428
        %v430 = vrot.slane %v429, 1
        %v431 = vadd.f32 %v429, %v430
        %v432 = vlog2.pop %v410
        %v433 = vmul.f32 %v432, 0.6931472
        %v434 = vlog2.pop %v417
        %v435 = vmul.f32 %v434, 0.6931472
        %v436 = vlog2.pop %v424
        %v437 = vmul.f32 %v436, 0.6931472
        %v438 = vlog2.pop %v431
        %v439 = vmul.f32 %v438, 0.6931472
        %v440 = vadd.f32 %v433, %v353
        %v441 = vadd.f32 %v435, %v360
        %v442 = vadd.f32 %v437, %v367
        %v443 = vadd.f32 %v439, %v374
        %444 = vst [vmem:[#allocation1] ss:$2 sm:$0xff] %v331
        %v445 = vld.sshfl [vmem:[#allocation1] sm:$0xff pattern:$0x75316420]
        %v446 = vld.sshfl [vmem:[#allocation1 + $0x8] sm:$0xff pattern:$0x75316420]
        %s447 = scalar_lea.vmem [#allocation1], 16
        %448 = vst [vmem:[%s447] ss:$2 sm:$0xff] %v332
        %v449 = vld.sshfl [vmem:[#allocation1 + $0x10] sm:$0xff pattern:$0x75316420]
        %v450 = vld.sshfl [vmem:[#allocation1 + $0x18] sm:$0xff pattern:$0x75316420]
        %v455 = vsel %vm327, %v445, 0.0
        %v456 = vsel %vm328, %v446, 0.0
        %v457 = vsel %vm329, %v449, 0.0
        %v458 = vsel %vm330, %v450, 0.0
        %v459 = vsel %vm346, %v455, 0.0
        %v460 = vrot.slane %v459, 4
        %v461 = vadd.f32 %v459, %v460
        %v462 = vrot.slane %v461, 2
        %v463 = vadd.f32 %v461, %v462
        %v464 = vrot.slane %v463, 1
        %v465 = vadd.f32 %v463, %v464
        %v466 = vsel %vm346, %v456, 0.0
        %v467 = vrot.slane %v466, 4
        %v468 = vadd.f32 %v466, %v467
        %v469 = vrot.slane %v468, 2
        %v470 = vadd.f32 %v468, %v469
        %v471 = vrot.slane %v470, 1
        %v472 = vadd.f32 %v470, %v471
        %v473 = vsel %vm346, %v457, 0.0
        %v474 = vrot.slane %v473, 4
        %v475 = vadd.f32 %v473, %v474
        %v476 = vrot.slane %v475, 2
        %v477 = vadd.f32 %v475, %v476
        %v478 = vrot.slane %v477, 1
        %v479 = vadd.f32 %v477, %v478
        %v480 = vsel %vm346, %v458, 0.0
        %v481 = vrot.slane %v480, 4
        %v482 = vadd.f32 %v480, %v481
        %v483 = vrot.slane %v482, 2
        %v484 = vadd.f32 %v482, %v483
        %v485 = vrot.slane %v484, 1
        %v486 = vadd.f32 %v484, %v485
        %v487 = vsub.f32 %v465, %v440
        %v488 = vsub.f32 %v472, %v441
        %v489 = vsub.f32 %v479, %v442
        %v490 = vsub.f32 %v486, %v443
        %v491 = vsub.f32 %v294, %v303
        %v492 = vsub.f32 %v295, %v304
        %495 = vst [vmem:[#allocation1] ss:$2 sm:$0xff] %v491
        %v496 = vld.sshfl [vmem:[#allocation1] sm:$0xff pattern:$0x75316420]
        %v497 = vld.sshfl [vmem:[#allocation1 + $0x8] sm:$0xff pattern:$0x75316420]
        %s498 = scalar_lea.vmem [#allocation1], 16
        %499 = vst [vmem:[%s498] ss:$2 sm:$0xff] %v492
        %v500 = vld.sshfl [vmem:[#allocation1 + $0x10] sm:$0xff pattern:$0x75316420]
        %v501 = vld.sshfl [vmem:[#allocation1 + $0x18] sm:$0xff pattern:$0x75316420]
        %v506 = vsel %vm346, %v496, -inf
        %v507 = vrot.slane %v506, 4
        %v508 = vmax.f32 %v506, %v507
        %v509 = vrot.slane %v508, 2
        %v510 = vmax.f32 %v508, %v509
        %v511 = vrot.slane %v510, 1
        %v512 = vmax.f32 %v510, %v511
        %v513 = vsel %vm346, %v497, -inf
        %v514 = vrot.slane %v513, 4
        %v515 = vmax.f32 %v513, %v514
        %v516 = vrot.slane %v515, 2
        %v517 = vmax.f32 %v515, %v516
        %v518 = vrot.slane %v517, 1
        %v519 = vmax.f32 %v517, %v518
        %v520 = vsel %vm346, %v500, -inf
        %v521 = vrot.slane %v520, 4
        %v522 = vmax.f32 %v520, %v521
        %v523 = vrot.slane %v522, 2
        %v524 = vmax.f32 %v522, %v523
        %v525 = vrot.slane %v524, 1
        %v526 = vmax.f32 %v524, %v525
        %v527 = vsel %vm346, %v501, -inf
        %v528 = vrot.slane %v527, 4
        %v529 = vmax.f32 %v527, %v528
        %v530 = vrot.slane %v529, 2
        %v531 = vmax.f32 %v529, %v530
        %v532 = vrot.slane %v531, 1
        %v533 = vmax.f32 %v531, %v532
        %v538 = vrot.slane %v519, 4
        %v539 = vrot.slane %v533, 4
        %v540 = vsel %vm346, %v512, %v538
        %v541 = vsel %vm346, %v526, %v539
        %v544 = vsub.f32 %v491, %v540
        %v545 = vsub.f32 %v492, %v541
        %v546 = vmul.f32 %v544, 1.442695
        %v547 = vpow.pop %v546
        %v548 = vmul.f32 %v545, 1.442695
        %v549 = vpow.pop %v548
        %552 = vst [vmem:[#allocation1] ss:$2 sm:$0xff] %v547
        %v553 = vld.sshfl [vmem:[#allocation1] sm:$0xff pattern:$0x75316420]
        %v554 = vld.sshfl [vmem:[#allocation1 + $0x8] sm:$0xff pattern:$0x75316420]
        %s555 = scalar_lea.vmem [#allocation1], 16
        %556 = vst [vmem:[%s555] ss:$2 sm:$0xff] %v549
        %v557 = vld.sshfl [vmem:[#allocation1 + $0x10] sm:$0xff pattern:$0x75316420]
        %v558 = vld.sshfl [vmem:[#allocation1 + $0x18] sm:$0xff pattern:$0x75316420]
        %v563 = vsel %vm346, %v553, 0.0
        %v564 = vrot.slane %v563, 4
        %v565 = vadd.f32 %v563, %v564
        %v566 = vrot.slane %v565, 2
        %v567 = vadd.f32 %v565, %v566
        %v568 = vrot.slane %v567, 1
        %v569 = vadd.f32 %v567, %v568
        %v570 = vsel %vm346, %v554, 0.0
        %v571 = vrot.slane %v570, 4
        %v572 = vadd.f32 %v570, %v571
        %v573 = vrot.slane %v572, 2
        %v574 = vadd.f32 %v572, %v573
        %v575 = vrot.slane %v574, 1
        %v576 = vadd.f32 %v574, %v575
        %v577 = vsel %vm346, %v557, 0.0
        %v578 = vrot.slane %v577, 4
        %v579 = vadd.f32 %v577, %v578
        %v580 = vrot.slane %v579, 2
        %v581 = vadd.f32 %v579, %v580
        %v582 = vrot.slane %v581, 1
        %v583 = vadd.f32 %v581, %v582
        %v584 = vsel %vm346, %v558, 0.0
        %v585 = vrot.slane %v584, 4
        %v586 = vadd.f32 %v584, %v585
        %v587 = vrot.slane %v586, 2
        %v588 = vadd.f32 %v586, %v587
        %v589 = vrot.slane %v588, 1
        %v590 = vadd.f32 %v588, %v589
        %v591 = vlog2.pop %v569
        %v592 = vmul.f32 %v591, 0.6931472
        %v593 = vlog2.pop %v576
        %v594 = vmul.f32 %v593, 0.6931472
        %v595 = vlog2.pop %v583
        %v596 = vmul.f32 %v595, 0.6931472
        %v597 = vlog2.pop %v590
        %v598 = vmul.f32 %v597, 0.6931472
        %v599 = vadd.f32 %v592, %v512
        %v600 = vadd.f32 %v594, %v519
        %v601 = vadd.f32 %v596, %v526
        %v602 = vadd.f32 %v598, %v533
        %603 = vst [vmem:[#allocation1] ss:$2 sm:$0xff] %v491
        %v604 = vld.sshfl [vmem:[#allocation1] sm:$0xff pattern:$0x75316420]
        %v605 = vld.sshfl [vmem:[#allocation1 + $0x8] sm:$0xff pattern:$0x75316420]
        %s606 = scalar_lea.vmem [#allocation1], 16
        %607 = vst [vmem:[%s606] ss:$2 sm:$0xff] %v492
        %v608 = vld.sshfl [vmem:[#allocation1 + $0x10] sm:$0xff pattern:$0x75316420]
        %v609 = vld.sshfl [vmem:[#allocation1 + $0x18] sm:$0xff pattern:$0x75316420]
        %v614 = vsel %vm327, %v604, 0.0
        %v615 = vsel %vm328, %v605, 0.0
        %v616 = vsel %vm329, %v608, 0.0
        %v617 = vsel %vm330, %v609, 0.0
        %v618 = vsel %vm346, %v614, 0.0
        %v619 = vrot.slane %v618, 4
        %v620 = vadd.f32 %v618, %v619
        %v621 = vrot.slane %v620, 2
        %v622 = vadd.f32 %v620, %v621
        %v623 = vrot.slane %v622, 1
        %v624 = vadd.f32 %v622, %v623
        %v625 = vsel %vm346, %v615, 0.0
        %v626 = vrot.slane %v625, 4
        %v627 = vadd.f32 %v625, %v626
        %v628 = vrot.slane %v627, 2
        %v629 = vadd.f32 %v627, %v628
        %v630 = vrot.slane %v629, 1
        %v631 = vadd.f32 %v629, %v630
        %v632 = vsel %vm346, %v616, 0.0
        %v633 = vrot.slane %v632, 4
        %v634 = vadd.f32 %v632, %v633
        %v635 = vrot.slane %v634, 2
        %v636 = vadd.f32 %v634, %v635
        %v637 = vrot.slane %v636, 1
        %v638 = vadd.f32 %v636, %v637
        %v639 = vsel %vm346, %v617, 0.0
        %v640 = vrot.slane %v639, 4
        %v641 = vadd.f32 %v639, %v640
        %v642 = vrot.slane %v641, 2
        %v643 = vadd.f32 %v641, %v642
        %v644 = vrot.slane %v643, 1
        %v645 = vadd.f32 %v643, %v644
        %v646 = vsub.f32 %v624, %v599
        %v647 = vsub.f32 %v631, %v600
        %v648 = vsub.f32 %v638, %v601
        %v649 = vsub.f32 %v645, %v602
        %v654 = vsel %vm316, %v489, %v487
        %v655 = vsel %vm316, %v490, %v488
        %v658 = vsel %vm314, %v654, 0.0
        %v659 = vsel %vm314, %v655, 0.0
        %v660 = vadd.f32 %v658, %v659
        %661 = vadd.xlane.f32.xlu0 %v660
        %v662 = vpop.xlane.xlu0 %661
        %v667 = vsel %vm316, %v648, %v646
        %v668 = vsel %vm316, %v649, %v647
        %v671 = vsel %vm314, %v667, 0.0
        %v672 = vsel %vm314, %v668, 0.0
        %v673 = vadd.f32 %v671, %v672
        %674 = vadd.xlane.f32.xlu0 %v673
        %v675 = vpop.xlane.xlu0 %674
        %p676 = scmp.eq.s32.totalorder %s21, 0
        // Predicated region
        $region53: #{tpu_custom_call.1} parent=35 // pred_check
          %p677 = pneg %p676
        $region54: #{tpu_custom_call.1} parent=35 // pred_check_branch
          %679 = sbr.rel (%p677) target = $region56
        $region55: #{tpu_custom_call.1} parent=35 // pred_region
          %s680 = smul.u32 %s22, 2
          %s681 = scalar_lea.vmem [#allocation2], %s680
          %vm682 = vcmask 1024
          %683 = vst.msk [vmem:[%s681] sm:$0x3] %vm682, %v662
          %s684 = sadd.s32 %s22, 2
          %s685 = smul.u32 %s684, 2
          %s686 = scalar_lea.vmem [#allocation2], %s685
          %687 = vst.msk [vmem:[%s686] sm:$0x3] %vm682, %v675
        $region56: #{tpu_custom_call.1} parent=35 // pred_fallthru
          _
        %p688 = scmp.ne.s32.totalorder %s21, 0
        // Predicated region
        $region57: #{tpu_custom_call.1} parent=35 // pred_check
          %p689 = pneg %p688
        $region58: #{tpu_custom_call.1} parent=35 // pred_check_branch
          %691 = sbr.rel (%p689) target = $region60
        $region59: #{tpu_custom_call.1} parent=35 // pred_region
          %s692 = smul.u32 %s22, 2
          %s693 = scalar_lea.vmem [#allocation2], %s692
          %v694 = vld [vmem:[%s693] sm:$0x3]
          %v695 = vadd.f32 %v694, %v662
          %vm696 = vcmask 1024
          %697 = vst.msk [vmem:[%s693] sm:$0x3] %vm696, %v695
          %s698 = sadd.s32 %s22, 2
          %s699 = smul.u32 %s698, 2
          %s700 = scalar_lea.vmem [#allocation2], %s699
          %v701 = vld [vmem:[%s700] sm:$0x3]
          %v702 = vadd.f32 %v701, %v675
          %703 = vst.msk [vmem:[%s700] sm:$0x3] %vm696, %v702
        $region60: #{tpu_custom_call.1} parent=35 // pred_fallthru
          _
        // Predicated region
        $region61: #{tpu_custom_call.1} parent=35 // pred_check
          %p704 = pneg %p676
        $region62: #{tpu_custom_call.1} parent=35 // pred_check_branch
          %706 = sbr.rel (%p704) target = $region64
        $region63: #{tpu_custom_call.1} parent=35 // pred_region
          %s707 = smul.u32 %s22, 2
          %s708 = scalar_lea.vmem [#allocation2], %s707
          %v709 = vld [vmem:[%s708] sm:$0x3]
          %s710 = scalar_lea.vmem %s4, %s707
          %vm711 = vcmask 1024
          %712 = vst.msk [vmem:[%s710] sm:$0x3] %vm711, %v709
          %s713 = sadd.s32 %s22, 2
          %s714 = smul.u32 %s713, 2
          %s715 = scalar_lea.vmem [#allocation2], %s714
          %v716 = vld [vmem:[%s715] sm:$0x3]
          %s717 = scalar_lea.vmem %s4, %s714
          %718 = vst.msk [vmem:[%s717] sm:$0x3] %vm711, %v716
        $region64: #{tpu_custom_call.1} parent=35 // pred_fallthru
          _
        // Predicated region
        $region65: #{tpu_custom_call.1} parent=35 // pred_check
          %p719 = pneg %p148
        $region66: #{tpu_custom_call.1} parent=35 // pred_check_branch
          %721 = sbr.rel (%p719) target = $region68
        $region67: #{tpu_custom_call.1} parent=35 // pred_region
          _
        $region68: #{tpu_custom_call.1} parent=35 // pred_fallthru
          _
        // Predicated region
        $region69: #{tpu_custom_call.1} parent=35 // pred_check
          %p722 = pneg %p148
        $region70: #{tpu_custom_call.1} parent=35 // pred_check_branch
          %724 = sbr.rel (%p722) target = $region72
        $region71: #{tpu_custom_call.1} parent=35 // pred_region
          _
        $region72: #{tpu_custom_call.1} parent=35 // pred_fallthru
          _
      $region36: #{tpu_custom_call.1} parent=5 // pred_fallthru
        _
      %p725 = scmp.le.s32.totalorder 2, %s12
      // Predicated region
      $region73: #{tpu_custom_call.1} parent=5 // pred_check
        %p726 = pneg %p725
      $region74: #{tpu_custom_call.1} parent=5 // pred_check_branch
        %728 = sbr.rel (%p726) target = $region76
      $region75: #{tpu_custom_call.1} parent=5 // pred_region
        %s729 = ssub.s32 %s12, 2
      $region76: #{tpu_custom_call.1} parent=5 // pred_fallthru
        _
    $region6: #{tpu_custom_call.1} parent=1 // loop_footer
      %s16 = sadd.s32 1, %s12
    $region7: #{tpu_custom_call.1} parent=1 // loop_footer_branch
      %11 = sbr.rel target = $region3
    $region8: #{tpu_custom_call.1} parent=1 // loop_exit
      _
    %730 = vsyncpa [#allocation4], 1
    %s731 = scalar_lea.sflag [#allocation4], 1
    %732 = vsyncpa %s731, 1
    %733 = vsyncpa [#allocation6], 1

</llo_original>
